<compile_context>
chip_gen: v6e
topology: v6e:2x2x1
jax: 0.10.0
libtpu: 0.0.40
codegen_flags: <defaults>
</compile_context>

<pallas_src>
import jax
import jax.numpy as jnp
from jax.experimental import pallas as pl
from jax.experimental.pallas import tpu as pltpu


def _round_up(v: int, m: int) -> int:
    return ((v + m - 1) // m) * m


def mlp_logsoftmax_kernel(x_ref, w_ref, b_ref, o_ref):
    # MXU matmul: x cast to bf16 in-register (VPU work, hidden under DMA/MXU),
    # W already bf16, f32 accumulation.
    logits = jnp.dot(
        x_ref[...].astype(jnp.bfloat16), w_ref[...],
        preferred_element_type=jnp.float32,
    )
    logits = logits + b_ref[...]                  # (TM, OUT_PAD) + (1, OUT_PAD), f32
    # Numerically stable log_softmax along the last axis (PyTorch dim=1 for 2-D x).
    # Padded classes carry bias = -1e30 -> exp()==0, never win the row max.
    m = jnp.max(logits, axis=-1, keepdims=True)
    shifted = logits - m
    lse = jnp.log(jnp.sum(jnp.exp(shifted), axis=-1, keepdims=True))
    out = shifted - lse
    # Store only the columns the output block actually has (real classes when the
    # class axis was padded for in-kernel math; full width when lane-dense).
    o_ref[...] = out[:, : o_ref.shape[1]].astype(o_ref.dtype)


def prepare_mlp_params(w, b):
    """One-time parameter prep (hoisted out of the per-call forward).

    w: (in_ch, out_ch) f32, b: (out_ch,) f32
    Returns (wp, bp, out_ch): bf16 weight padded to a 128-multiple class axis,
    f32 bias row with -1e30 sentinels in the padded columns.
    """
    in_ch, out_ch = w.shape
    out_pad = _round_up(out_ch, 128)
    wp = jnp.pad(w.astype(jnp.bfloat16), ((0, 0), (0, out_pad - out_ch)))
    bp = jnp.full((1, out_pad), -1e30, dtype=jnp.float32)
    bp = bp.at[0, :out_ch].set(b.astype(jnp.float32))
    return wp, bp, out_ch


def mlp_net_forward(x, wp, bp, out_ch, *, block_rows=1024):
    """x: (N, in_ch) f32; wp/bp from prepare_mlp_params -> (N, out_ch) f32."""
    N, in_ch = x.shape
    out_pad = wp.shape[1]
    assert wp.shape[0] == in_ch and bp.shape == (1, out_pad)

    # Output store width: masked store of the real columns when out_ch is small,
    # lane-dense padded store only when it is already aligned or large.
    out_store = out_pad if (out_ch == out_pad or out_ch >= 512) else out_ch

    # Row tiling: pick the number of steps first, then the smallest multiple-of-8
    # tile covering N in that many steps (minimizes padded rows).
    num_steps = max(pl.cdiv(N, block_rows), 1)
    # v7x has 2 TensorCores per chip: give the "parallel" row axis >= 2 steps when
    # there is enough work so both cores get a share (no effect on v5e/v6e).
    if num_steps == 1 and N >= 256:
        num_steps = 2
    tm = _round_up(pl.cdiv(N, num_steps), 8)

    # Per-step VMEM footprint: double-buffered x (f32) and out (f32) tiles,
    # resident W (bf16) + bias (f32), plus the live f32 logits tile.
    def step_bytes(tm_):
        return (2 * tm_ * in_ch * 4
                + 2 * tm_ * out_store * 4
                + 2 * in_ch * out_pad * 2
                + 2 * out_pad * 4
                + tm_ * out_pad * 4)

    budget = 24 * 1024 * 1024          # comfortable under v5e scoped / v7x physical
    while tm > 8 and step_bytes(tm) > budget:
        tm = max(_round_up(tm // 2, 8), 8)
    num_steps = pl.cdiv(N, tm)
    n_pad = tm * num_steps

    xp = x if n_pad == N else jnp.pad(x, ((0, n_pad - N), (0, 0)))

    vmem_limit = int(min(max(2 * step_bytes(tm), 16 * 1024 * 1024),
                         64 * 1024 * 1024))

    out = pl.pallas_call(
        mlp_logsoftmax_kernel,
        out_shape=jax.ShapeDtypeStruct((n_pad, out_store), jnp.float32),
        grid=(num_steps,),
        in_specs=[
            pl.BlockSpec((tm, in_ch), lambda i: (i, 0)),        # x streamed per tile (f32)
            pl.BlockSpec((in_ch, out_pad), lambda i: (0, 0)),   # VMEM-resident bf16 weight
            pl.BlockSpec((1, out_pad), lambda i: (0, 0)),       # VMEM-resident f32 bias
        ],
        out_specs=pl.BlockSpec((tm, out_store), lambda i: (i, 0)),
        compiler_params=pltpu.CompilerParams(
            dimension_semantics=("parallel",),
            vmem_limit_bytes=vmem_limit,
        ),
    )(xp, wp, bp)

    if n_pad != N:
        out = out[:N]
    if out_store != out_ch:
        out = out[:, :out_ch]
    return out


def init_linear_params(key, in_ch, out_ch):
    # Deterministic init mimicking torch.nn.Linear.reset_parameters():
    # weight ~ U(-1/sqrt(in), 1/sqrt(in)), bias ~ U(-1/sqrt(in), 1/sqrt(in)).
    kw, kb = jax.random.split(key)
    bound = 1.0 / jnp.sqrt(jnp.float32(in_ch))
    # torch weight is (out, in); we store its transpose (in, out) for x @ W.
    w = jax.random.uniform(kw, (in_ch, out_ch), jnp.float32, -bound, bound)
    b = jax.random.uniform(kb, (out_ch,), jnp.float32, -bound, bound)
    return w, b


if __name__ == "__main__":
    key = jax.random.PRNGKey(0)
    k_x, k_p = jax.random.split(key)

    N, in_channel, out_channel = 8, 32, 16
    x = jax.random.normal(k_x, (N, in_channel), jnp.float32)
    w, b = init_linear_params(k_p, in_channel, out_channel)

    # One-time parameter preparation (hoisted out of the forward call).
    wp, bp, out_ch = prepare_mlp_params(w, b)

    out = mlp_net_forward(x, wp, bp, out_ch)
    out = jax.block_until_ready(out)

    # Reference in plain JAX with the same bf16-operand / f32-accumulation recipe.
    logits_ref = jnp.dot(
        x.astype(jnp.bfloat16), w.astype(jnp.bfloat16),
        preferred_element_type=jnp.float32,
    ) + b
    ref = jax.nn.log_softmax(logits_ref, axis=1)

    assert out.shape == (N, out_channel)
    assert jnp.allclose(out, ref, atol=1e-4, rtol=1e-4), float(jnp.max(jnp.abs(out - ref)))

    print("KERNEL_OK")
</pallas_src>

<mosaic_0001>
module attributes {stable_mosaic.version = 11 : i64} {
  func.func @mlp_logsoftmax_kernel(%arg0: i32, %arg1: memref<8x32xf32, #tpu.memory_space<vmem>>, %arg2: memref<32x128xbf16, #tpu.memory_space<vmem>>, %arg3: memref<1x128xf32, #tpu.memory_space<vmem>>, %arg4: memref<8x16xf32, #tpu.memory_space<vmem>>) attributes {dimension_semantics = [#tpu.dimension_semantics<parallel>], iteration_bounds = array<i64: 1>, scalar_prefetch = 0 : i64, scratch_operands = 0 : i64, tpu.core_type = #tpu.core_type<tc>, window_params = [{transform_indices = @transform_0, window_bounds = array<i64: 8, 32>}, {pipeline_mode = #tpu.pipeline_mode<synchronous>, transform_indices = @transform_1, window_bounds = array<i64: 32, 128>}, {pipeline_mode = #tpu.pipeline_mode<synchronous>, transform_indices = @transform_2, window_bounds = array<i64: 1, 128>}, {transform_indices = @transform_3, window_bounds = array<i64: 8, 16>}]} {
    %c0 = arith.constant 0 : index
    %c0_0 = arith.constant 0 : index
    %0 = vector.load %arg1[%c0, %c0_0] : memref<8x32xf32, #tpu.memory_space<vmem>>, vector<8x32xf32>
    %1 = arith.truncf %0 : vector<8x32xf32> to vector<8x32xbf16>
    %c0_1 = arith.constant 0 : index
    %c0_2 = arith.constant 0 : index
    %2 = vector.load %arg2[%c0_1, %c0_2] : memref<32x128xbf16, #tpu.memory_space<vmem>>, vector<32x128xbf16>
    %cst = arith.constant dense<0.000000e+00> : vector<8x128xf32>
    %3 = tpu.matmul %1, %2, %cst {dimension_numbers = #tpu.dot_dimension_numbers<[1], [0], [0], [1], [0, 0, 1, 1], [], []>} : vector<8x32xbf16>, vector<32x128xbf16>, vector<8x128xf32> -> vector<8x128xf32>
    %c0_3 = arith.constant 0 : index
    %c0_4 = arith.constant 0 : index
    %4 = vector.load %arg3[%c0_3, %c0_4] : memref<1x128xf32, #tpu.memory_space<vmem>>, vector<1x128xf32>
    %5 = vector.broadcast %4 : vector<1x128xf32> to vector<8x128xf32>
    %6 = arith.addf %3, %5 : vector<8x128xf32>
    %cst_5 = arith.constant dense<0xFF800000> : vector<8xf32>
    %7 = vector.multi_reduction <maximumf>, %6, %cst_5 [1] : vector<8x128xf32> to vector<8xf32>
    %8 = vector.shape_cast %7 : vector<8xf32> to vector<8x1xf32>
    %9 = vector.broadcast %8 : vector<8x1xf32> to vector<8x128xf32>
    %10 = arith.subf %6, %9 : vector<8x128xf32>
    %11 = math.exp %10 : vector<8x128xf32>
    %cst_6 = arith.constant dense<0.000000e+00> : vector<8xf32>
    %12 = vector.multi_reduction <add>, %11, %cst_6 [1] : vector<8x128xf32> to vector<8xf32>
    %13 = vector.shape_cast %12 : vector<8xf32> to vector<8x1xf32>
    %14 = math.log %13 : vector<8x1xf32>
    %15 = vector.broadcast %14 : vector<8x1xf32> to vector<8x128xf32>
    %16 = arith.subf %10, %15 : vector<8x128xf32>
    %17 = vector.extract_strided_slice %16 {offsets = [0, 0], sizes = [8, 16], strides = [1, 1]} : vector<8x128xf32> to vector<8x16xf32>
    %c0_7 = arith.constant 0 : index
    %c0_8 = arith.constant 0 : index
    %18 = vector.load %arg4[%c0_7, %c0_8] : memref<8x16xf32, #tpu.memory_space<vmem>>, vector<8x16xf32>
    tpu.vector_store %arg4[%c0_7, %c0_8], %17 {strides = array<i32>} : memref<8x16xf32, #tpu.memory_space<vmem>>, vector<8x16xf32>,
    return
  }
  func.func @transform_0(%arg0: i32) -> (i32, i32) {
    %c0_i32 = arith.constant 0 : i32
    %c0_i32_0 = arith.constant 0 : i32
    return %arg0, %c0_i32 : i32, i32
  }
  func.func @transform_1(%arg0: i32) -> (i32, i32) {
    %c0_i32 = arith.constant 0 : i32
    %c0_i32_0 = arith.constant 0 : i32
    %c0_i32_1 = arith.constant 0 : i32
    return %c0_i32, %c0_i32_0 : i32, i32
  }
  func.func @transform_2(%arg0: i32) -> (i32, i32) {
    %c0_i32 = arith.constant 0 : i32
    %c0_i32_0 = arith.constant 0 : i32
    %c0_i32_1 = arith.constant 0 : i32
    return %c0_i32, %c0_i32_0 : i32, i32
  }
  func.func @transform_3(%arg0: i32) -> (i32, i32) {
    %c0_i32 = arith.constant 0 : i32
    %c0_i32_0 = arith.constant 0 : i32
    return %arg0, %c0_i32 : i32, i32
  }
}

</mosaic_0001>

<llo_original>
// kernel: tpu_custom_call.1
$region0: #{tpu_custom_call.1}
  #allocation0 [shape = 'u32[]', space=smem, size = 0x4, offset = 0x4, fixed_abs, tag = 'smem constant byte address 0x4 - core index']
  #allocation1 [shape = 'u32[144,128]{1,0:T(1,128)}', space=vmem, size = 0x12000, scoped, tag = 'internal scratch']
  %s0 = inlined_call_operand.hbm [shape: f32[8,32], index: 0, kind: input, shape index: {}]
  %s1 = inlined_call_operand.hbm [shape: bf16[32,128], index: 1, kind: input, shape index: {}]
  %s2 = inlined_call_operand.vmem [shape: f32[1,128], index: 2, kind: input, shape index: {}]
  %s3 = inlined_call_operand.hbm [shape: f32[8,16], index: 3, kind: output, shape index: {}]
  %s4 = sld [smem:[#allocation0]]
  $region30: #{tpu_custom_call.1} parent=0
    _
  %s6 = ssub.s32 1, %s4
  %s7 = scalar_select 0, %s6, %s4
  $region1: #{tpu_custom_call.1} parent=0
    #allocation2 [shape = 'u8[4096]{0}', space=vmem, size = 0x1000, scoped, tag = 'input window, operand 0, single buffered']
    #allocation3 [shape = 's32[1]{0}', space=sflag, size = 0x4, scoped, tag = 'scoped memory for tpu_custom_call.1']
    #allocation4 [shape = 's32[1]{0}', space=sflag, size = 0x4, scoped, tag = 'scoped memory for tpu_custom_call.1']
    #allocation5 [shape = 'u8[8192]{0}', space=vmem, size = 0x2000, scoped, tag = 'input window, operand 1, single buffered']
    #allocation6 [shape = 's32[1]{0}', space=sflag, size = 0x4, scoped, tag = 'scoped memory for tpu_custom_call.1']
    #allocation7 [shape = 'u8[4096]{0}', space=vmem, size = 0x1000, scoped, tag = 'output window, operand 0, single buffered']
    %8 = vsyncpa [#allocation3], 0
    %9 = vsyncpa [#allocation6], 0
    %10 = vsyncpa [#allocation4], 0
    // Predicated region
    $region2: #{tpu_custom_call.1} parent=1 // pred_check
      _
    $region3: #{tpu_custom_call.1} parent=1 // pred_check_branch
      %12 = sbr.rel (0) target = $region5
    $region4: #{tpu_custom_call.1} parent=1 // pred_region
      %s14 = ssub.s32 128, 128
      %15 = vsyncadd [#allocation3], %s14
      %s17 = sshll.u32 [#allocation2], 4
      %s18 = int_to_ptr.vmem [resolvable:$true] %s17
      %20 = dma.hbm_to_vmem [thread:$0]  %s0, 128, %s18, [#allocation3]
    $region5: #{tpu_custom_call.1} parent=1 // pred_fallthru
      _
    // Predicated region
    $region6: #{tpu_custom_call.1} parent=1 // pred_check
      _
    $region7: #{tpu_custom_call.1} parent=1 // pred_check_branch
      %22 = sbr.rel (0) target = $region9
    $region8: #{tpu_custom_call.1} parent=1 // pred_region
      %s24 = ssub.s32 256, 256
      %25 = vsyncadd [#allocation6], %s24
      %s26 = sshll.u32 [#allocation5], 4
      %s27 = int_to_ptr.vmem [resolvable:$true] %s26
      %32 = dma.hbm_to_vmem [thread:$0]  %s1, 256, %s27, [#allocation6], 64, 64, 4
    $region9: #{tpu_custom_call.1} parent=1 // pred_fallthru
      _
    // Predicated region
    $region10: #{tpu_custom_call.1} parent=1 // pred_check
      _
    $region11: #{tpu_custom_call.1} parent=1 // pred_check_branch
      %34 = sbr.rel (0) target = $region13
    $region12: #{tpu_custom_call.1} parent=1 // pred_region
      _
    $region13: #{tpu_custom_call.1} parent=1 // pred_fallthru
      _
    // Predicated region
    $region14: #{tpu_custom_call.1} parent=1 // pred_check
      _
    $region15: #{tpu_custom_call.1} parent=1 // pred_check_branch
      %36 = sbr.rel (0) target = $region17
    $region16: #{tpu_custom_call.1} parent=1 // pred_region
      %37 = dma.done [#allocation3], 128
    $region17: #{tpu_custom_call.1} parent=1 // pred_fallthru
      _
    // Predicated region
    $region18: #{tpu_custom_call.1} parent=1 // pred_check
      _
    $region19: #{tpu_custom_call.1} parent=1 // pred_check_branch
      %39 = sbr.rel (0) target = $region21
    $region20: #{tpu_custom_call.1} parent=1 // pred_region
      %40 = dma.done [#allocation6], 256
    $region21: #{tpu_custom_call.1} parent=1 // pred_fallthru
      _
    %v42 = vld [vmem:[#allocation2] sm:$0xff]
    %v43 = vpack.c.bf16 %v42, %v42
    %v44 = vld [vmem:[#allocation5] sm:$0xf]
    %v45 = vld [vmem:[#allocation5 + $0x4] sm:$0xf]
    %v46 = vld [vmem:[#allocation5 + $0x8] sm:$0xf]
    %v47 = vld [vmem:[#allocation5 + $0xc] sm:$0xf]
    %v48 = vld [vmem:[%s2] sm:$0x1]
    %v50 = vlaneseq
    %v51 = vshrl.u32 %v50, 7
    %v52 = vsub.s32 0, %v51
    %v53 = vrot.slane %v48, %v52
    %v59 = vunpack.c.l.b16 %v44
    %v60 = vunpack.c.l.b16 %v45
    %v61 = vunpack.c.l.b16 %v46
    %v62 = vunpack.c.l.b16 %v47
    %v63 = vpack.c.b16 %v60, %v59
    %v64 = vpack.c.b16 %v62, %v61
    %vm67 = vcmask 261120
    %v69 = vsel %vm67, %v43, 0
    %71 = vmatprep.subr.bf16.mxu0 0
    %72 = vmatpush1.bf16.msra.mxu0 0
    %73 = vmatprep.subr.bf16.mxu0 0
    %74 = vmatpush1.bf16.msra.mxu0 0
    %75 = vmatprep.subr.bf16.mxu0 0
    %76 = vmatpush1.bf16.msra.mxu0 0
    %77 = vmatprep.subr.bf16.mxu0 0
    %78 = vmatpush1.bf16.msra.mxu0 0
    %79 = vmatprep.subr.bf16.mxu0 0
    %80 = vmatpush1.bf16.msra.mxu0 0
    %81 = vmatprep.subr.bf16.mxu0 0
    %82 = vmatpush1.bf16.msra.mxu0 0
    %83 = vmatprep.subr.bf16.mxu0 0
    %84 = vmatpush1.bf16.msra.mxu0 %v64
    %85 = vmatprep.subr.bf16.mxu0 0
    %86 = vmatpush1.bf16.msra.mxu0 %v63
    %87 = vmatprep.subr.bf16.mxu0 0
    %88 = vmatpush2.bf16.msra.mxu0 0
    %89 = vmatprep.subr.bf16.mxu0 0
    %90 = vmatpush2.bf16.msra.mxu0 0
    %91 = vmatprep.subr.bf16.mxu0 0
    %92 = vmatpush2.bf16.msra.mxu0 0
    %93 = vmatprep.subr.bf16.mxu0 0
    %94 = vmatpush2.bf16.msra.mxu0 0
    %95 = vmatprep.subr.bf16.mxu0 0
    %96 = vmatpush2.bf16.msra.mxu0 0
    %97 = vmatprep.subr.bf16.mxu0 0
    %98 = vmatpush2.bf16.msra.mxu0 0
    %99 = vmatprep.subr.bf16.mxu0 0
    %100 = vmatpush2.bf16.msra.mxu0 0
    %101 = vmatprep.subr.bf16.mxu0 0
    %102 = vmatpush2.bf16.msra.mxu0 0
    %103 = vmatprep.mubr.bf16.mxu0 0
    %104 = vmatmul.mubr.bf16.gmra.mxu0 %v69
    %v105 = vpop.f32.mrf.mxu0
    %v106 = vadd.f32 %v53, %v105
    %v107 = vpop.f32.mrf.mxu0
    %v108 = vpop.f32.mrf.mxu0
    %v109 = vpop.f32.mrf.mxu0
    %110 = vdwg.mxu0
    %111 = vmax.xlane.f32.xlu0 %v106
    %v112 = vpop.xlane.xlu0 %111
    %v113 = vsub.f32 %v106, %v112
    %v114 = vmul.f32 %v113, 1.442695
    %v115 = vpow.pop %v114
    %116 = vadd.xlane.f32.xlu0 %v115
    %v117 = vpop.xlane.xlu0 %116
    %v118 = vlog2.pop %v117
    %v119 = vmul.f32 %v118, 0.6931472
    %v120 = vsub.f32 %v113, %v119
    %vm121 = vcmask 130048
    %122 = vst.msk [vmem:[#allocation7] sm:$0xff] %vm121, %v120
    // Predicated region
    $region22: #{tpu_custom_call.1} parent=1 // pred_check
      _
    $region23: #{tpu_custom_call.1} parent=1 // pred_check_branch
      %124 = sbr.rel (0) target = $region25
    $region24: #{tpu_custom_call.1} parent=1 // pred_region
      %s126 = ssub.s32 128, 128
      %127 = vsyncadd [#allocation4], %s126
      %s129 = sshll.u32 [#allocation7], 4
      %s130 = int_to_ptr.vmem [resolvable:$true] %s129
      %132 = dma.vmem_to_hbm [thread:$0]  %s130, 128, %s3, [#allocation4]
    $region25: #{tpu_custom_call.1} parent=1 // pred_fallthru
      _
    // Predicated region
    $region26: #{tpu_custom_call.1} parent=1 // pred_check
      _
    $region27: #{tpu_custom_call.1} parent=1 // pred_check_branch
      %134 = sbr.rel (0) target = $region29
    $region28: #{tpu_custom_call.1} parent=1 // pred_region
      %135 = dma.done [#allocation4], 128
    $region29: #{tpu_custom_call.1} parent=1 // pred_fallthru
      _
    %136 = vsyncpa [#allocation3], 1
    %137 = vsyncpa [#allocation6], 1
    %138 = vsyncpa [#allocation4], 1

</llo_original>
